<compile_context>
chip_gen: v5e
topology: v5e:2x2
jax: 0.10.0
libtpu: 0.0.40
codegen_flags: <defaults>
</compile_context>

<pallas_src>
import functools

import jax
import jax.numpy as jnp
from jax import lax
from jax.experimental import pallas as pl
from jax.experimental.pallas import tpu as pltpu


def _round_up(x, m):
    return (x + m - 1) // m * m


# ----------------------------------------------------------------------------
# Pallas kernel 1: tiled bf16 MXU matmul with fused BatchNorm statistics
# ----------------------------------------------------------------------------
def _matmul_kernel(a_ref, b_ref, o_ref, s_ref, ss_ref, acc_ref, *,
                   m_total, tm, mask_rows):
    @pl.when(pl.program_id(2) == 0)
    def _():
        acc_ref[...] = jnp.zeros_like(acc_ref)

    acc_ref[...] += jnp.dot(a_ref[...], b_ref[...],
                            preferred_element_type=jnp.float32)

    # Only write the output tile (and the fused BN statistics) on the last
    # K step; earlier steps only touch the f32 accumulator scratch.
    @pl.when(pl.program_id(2) == pl.num_programs(2) - 1)
    def _():
        acc = acc_ref[...]
        o_ref[...] = acc
        if mask_rows:
            # Ragged last M block: zero the rows past the logical extent so
            # the per-channel sums stay exact (the bogus rows of the output
            # tile itself are clipped by the writeback DMA).
            rows = pl.program_id(0) * tm + lax.broadcasted_iota(
                jnp.int32, (tm, 1), 0)
            acc = jnp.where(rows < m_total, acc, 0.0)
        s_ref[...] = jnp.sum(acc, axis=0, keepdims=True).reshape(s_ref.shape)
        ss_ref[...] = jnp.sum(acc * acc, axis=0,
                              keepdims=True).reshape(ss_ref.shape)


def _pick_tiles(M, N, K):
    tm = M if M <= 256 else 256
    if N <= 128:
        tn = N
    elif N % 256 == 0:
        tn = 256
    else:
        tn = 128
    tk = K if K <= 2048 else 512
    return tm, tn, tk


def pallas_matmul(a, b):
    """a: (M, K), b: (K, N) -> (out f32 (M, N), col_sum (N,), col_sumsq (N,)).

    MXU compute in bf16 with an f32 accumulator.  The per-column sum and
    sum-of-squares of the f32 result (needed by the following BatchNorm) are
    produced in the same pass so the conv output is not re-read from HBM for
    the batch statistics.
    """
    M, K = a.shape
    K2, N = b.shape
    assert K == K2
    a = a.astype(jnp.bfloat16)
    b = b.astype(jnp.bfloat16)

    tm, tn, tk = _pick_tiles(M, N, K)
    # Only the K (reduction) axis needs zero padding for correctness; ragged
    # M / N tail blocks are handled by row masking / output clipping.
    Kp = _round_up(K, tk)
    if Kp != K:
        a = jnp.pad(a, ((0, 0), (0, Kp - K)))
        b = jnp.pad(b, ((0, Kp - K), (0, 0)))

    nm = (M + tm - 1) // tm
    nn = (N + tn - 1) // tn
    nk = Kp // tk

    out, s3, ss3 = pl.pallas_call(
        functools.partial(_matmul_kernel, m_total=M, tm=tm,
                          mask_rows=(M % tm != 0)),
        out_shape=(
            jax.ShapeDtypeStruct((M, N), jnp.float32),
            jax.ShapeDtypeStruct((nm, 1, N), jnp.float32),
            jax.ShapeDtypeStruct((nm, 1, N), jnp.float32),
        ),
        grid_spec=pltpu.PrefetchScalarGridSpec(
            num_scalar_prefetch=0,
            grid=(nm, nn, nk),
            in_specs=[
                pl.BlockSpec((tm, tk), lambda i, j, k: (i, k)),
                pl.BlockSpec((tk, tn), lambda i, j, k: (k, j)),
            ],
            out_specs=[
                pl.BlockSpec((tm, tn), lambda i, j, k: (i, j)),
                pl.BlockSpec((1, 1, tn), lambda i, j, k: (i, 0, j)),
                pl.BlockSpec((1, 1, tn), lambda i, j, k: (i, 0, j)),
            ],
            scratch_shapes=[pltpu.VMEM((tm, tn), jnp.float32)],
        ),
        compiler_params=pltpu.CompilerParams(
            dimension_semantics=("parallel", "parallel", "arbitrary")),
    )(a, b)
    return out, jnp.sum(s3, axis=(0, 1)), jnp.sum(ss3, axis=(0, 1))


# ----------------------------------------------------------------------------
# Pallas kernel 2: fused BN-affine (+ residual) (+ ReLU), tiled over rows
# ----------------------------------------------------------------------------
def _affine_kernel(x_ref, s_ref, b_ref, o_ref, *, relu):
    y = x_ref[...] * s_ref[...] + b_ref[...]
    if relu:
        y = jnp.maximum(y, 0.0)
    o_ref[...] = y


def _affine_res_kernel(x_ref, s_ref, b_ref, r_ref, o_ref, *, relu):
    y = x_ref[...] * s_ref[...] + b_ref[...] + r_ref[...]
    if relu:
        y = jnp.maximum(y, 0.0)
    o_ref[...] = y


def pallas_affine(x, scale, bias, res, relu):
    """y = maybe_relu(x * scale + bias [+ res]);  x/res: (M, C), scale/bias: (C,)."""
    M, C = x.shape
    tm = M if M <= 512 else 512
    nm = (M + tm - 1) // tm
    s2 = scale.reshape(1, C).astype(jnp.float32)
    b2 = bias.reshape(1, C).astype(jnp.float32)
    x_spec = pl.BlockSpec((tm, C), lambda i: (i, 0))
    v_spec = pl.BlockSpec((1, C), lambda i: (0, 0))

    if res is None:
        kernel = functools.partial(_affine_kernel, relu=relu)
        in_specs = [x_spec, v_spec, v_spec]
        operands = (x.astype(jnp.float32), s2, b2)
    else:
        kernel = functools.partial(_affine_res_kernel, relu=relu)
        in_specs = [x_spec, v_spec, v_spec, x_spec]
        operands = (x.astype(jnp.float32), s2, b2, res.astype(jnp.float32))

    return pl.pallas_call(
        kernel,
        out_shape=jax.ShapeDtypeStruct((M, C), jnp.float32),
        grid_spec=pltpu.PrefetchScalarGridSpec(
            num_scalar_prefetch=0,
            grid=(nm,),
            in_specs=in_specs,
            out_specs=x_spec,
        ),
        compiler_params=pltpu.CompilerParams(
            dimension_semantics=("parallel",)),
    )(*operands)


# ----------------------------------------------------------------------------
# Conv / BN building blocks (im2col glue in JAX, GEMM + elementwise in Pallas)
# ----------------------------------------------------------------------------
def conv2d_nhwc(x, w, stride, pad):
    """x: (N,H,W,Cin) NHWC; w: (Cout,Cin,kh,kw) PyTorch layout.

    Returns (y (N,Ho,Wo,Cout) f32, col_sum (Cout,), col_sumsq (Cout,), count).
    """
    # TODO(synk): im2col patches are still materialized in HBM (now bf16);
    # fully folding the kh*kw taps into the GEMM K-axis via index_maps over the
    # padded NHWC input would remove the remaining bandwidth blow-up.
    Nb, H, W, Cin = x.shape
    Cout, _, kh, kw = w.shape
    xb = x.astype(jnp.bfloat16)
    if pad:
        xb = jnp.pad(xb, ((0, 0), (pad, pad), (pad, pad), (0, 0)))
    Ho = (H + 2 * pad - kh) // stride + 1
    Wo = (W + 2 * pad - kw) // stride + 1

    if kh == 1 and kw == 1 and stride == 1:
        a = xb.reshape(Nb * Ho * Wo, Cin)
    else:
        taps = []
        for ki in range(kh):
            for kj in range(kw):
                tap = lax.slice(
                    xb,
                    (0, ki, kj, 0),
                    (Nb, ki + stride * (Ho - 1) + 1,
                     kj + stride * (Wo - 1) + 1, Cin),
                    (1, stride, stride, 1))
                taps.append(tap)
        a = jnp.concatenate(taps, axis=-1).reshape(Nb * Ho * Wo, kh * kw * Cin)
    bmat = jnp.transpose(w, (2, 3, 1, 0)).reshape(kh * kw * Cin, Cout)
    y, s, ss = pallas_matmul(a, bmat)
    return y.reshape(Nb, Ho, Wo, Cout), s, ss, Nb * Ho * Wo


def bn_act(y, stats, gamma, beta, relu=True, residual=None, eps=1e-5):
    """Training-mode BatchNorm2d forward (biased variance) + residual + ReLU."""
    Nb, H, W, C = y.shape
    col_sum, col_sumsq, count = stats
    mean = col_sum / count
    var = jnp.maximum(col_sumsq / count - mean * mean, 0.0)
    scale = gamma / jnp.sqrt(var + eps)
    bias = beta - mean * scale
    y2 = y.reshape(Nb * H * W, C)
    res2 = None if residual is None else residual.reshape(Nb * H * W, C)
    out = pallas_affine(y2, scale, bias, res2, relu)
    return out.reshape(Nb, H, W, C)


def conv_bn(x, w, bn, stride, pad, relu, residual=None):
    y, s, ss, cnt = conv2d_nhwc(x, w, stride, pad)
    return bn_act(y, (s, ss, cnt), bn[0], bn[1], relu=relu, residual=residual)


# Output-parity -> (kernel tap used at window offset 0, at offset 1).
_DECONV_TAPS = {0: (3, 1), 1: (2, 0)}


def deconv_bn(x, w_dec, bn):
    """ConvTranspose2d(C,C,k=4,s=2,p=1,bias=False) + BatchNorm (no ReLU).

    Decomposed into four sub-pixel 2x2 convolutions (one per output-pixel
    parity) instead of zero-dilating the input and running a 4x4 conv.
    """
    Nb, H, W, Cin = x.shape
    Cout = w_dec.shape[1]
    xp = jnp.pad(x.astype(jnp.bfloat16), ((0, 0), (1, 1), (1, 1), (0, 0)))

    col_sum = jnp.zeros((Cout,), jnp.float32)
    col_sumsq = jnp.zeros((Cout,), jnp.float32)
    rows = []
    for py in (0, 1):
        kh0, kh1 = _DECONV_TAPS[py]
        cols = []
        for px in (0, 1):
            kw0, kw1 = _DECONV_TAPS[px]
            # Equivalent plain-conv weight (Cout, Cin, 2, 2) for this parity.
            wsub = jnp.stack([
                jnp.stack([w_dec[:, :, kh0, kw0], w_dec[:, :, kh0, kw1]], -1),
                jnp.stack([w_dec[:, :, kh1, kw0], w_dec[:, :, kh1, kw1]], -1),
            ], axis=-2)
            wsub = jnp.transpose(wsub, (1, 0, 2, 3))
            xin = lax.slice(xp, (0, py, px, 0),
                            (Nb, py + H + 1, px + W + 1, Cin))
            ysub, s, ss, _ = conv2d_nhwc(xin, wsub, 1, 0)
            cols.append(ysub)
            col_sum = col_sum + s
            col_sumsq = col_sumsq + ss
        rows.append(jnp.stack(cols, axis=0))
    y = jnp.stack(rows, axis=0)                        # (py, px, N, H, W, C)
    y = jnp.transpose(y, (2, 3, 0, 4, 1, 5)).reshape(Nb, 2 * H, 2 * W, Cout)
    count = Nb * (2 * H) * (2 * W)
    return bn_act(y, (col_sum, col_sumsq, count), bn[0], bn[1], relu=False)


# ----------------------------------------------------------------------------
# Model definition (structure mirrors the PyTorch UNetResNet)
# ----------------------------------------------------------------------------
class _PRNG:
    def __init__(self, seed):
        self.key = jax.random.PRNGKey(seed)

    def next(self):
        self.key, sub = jax.random.split(self.key)
        return sub


def init_params():
    rng = _PRNG(42)

    def conv_w(cout, cin, k):
        fan_in = cin * k * k
        std = (2.0 / fan_in) ** 0.5
        return jax.random.normal(rng.next(), (cout, cin, k, k), jnp.float32) * std

    def deconv_w(cin, cout, k):
        fan_in = cout * k * k
        std = (2.0 / fan_in) ** 0.5
        return jax.random.normal(rng.next(), (cin, cout, k, k), jnp.float32) * std

    def bn(c):
        return (jnp.ones((c,), jnp.float32), jnp.zeros((c,), jnp.float32))

    def basic_block(cin, cout, downsample):
        p = {"w1": conv_w(cout, cin, 3), "bn1": bn(cout),
             "w2": conv_w(cout, cout, 3), "bn2": bn(cout)}
        if downsample:
            p["wd"] = conv_w(cout, cin, 1)
            p["bnd"] = bn(cout)
        return p

    def up_block(cin, mid, cout):
        return {"w3": conv_w(mid, cin, 3), "bn3": bn(mid),
                "wup": deconv_w(mid, mid, 4), "bnup": bn(mid),
                "w1": conv_w(cout, mid, 1), "bn1": bn(cout)}

    # TODO(synk): torchvision pretrained resnet18 weights cannot be loaded
    # here; encoder uses the same deterministic kaiming-style init as the rest.
    params = {
        "input": {"w": conv_w(64, 3, 7), "bn": bn(64)},
        "layer1": [basic_block(64, 64, False), basic_block(64, 64, False)],
        "layer2": [basic_block(64, 128, True), basic_block(128, 128, False)],
        "layer3": [basic_block(128, 256, True), basic_block(256, 256, False)],
        "layer4": [basic_block(256, 512, True), basic_block(512, 512, False)],
        "center": {"w3": conv_w(512, 512, 3), "bn3": bn(512),
                   "w1": conv_w(512, 512, 1), "bn1": bn(512)},
        "dec0": up_block(512, 256, 512),
        "dec1": up_block(1024, 256, 256),
        "dec2": up_block(512, 64, 128),
        "dec3": up_block(256, 32, 64),
        "dec4": {"w": conv_w(64, 128, 3), "bn": bn(64)},
        "finish": {"w": conv_w(32, 64, 3), "bn": bn(32)},
        "out": {"w": conv_w(4, 32, 1), "bn": bn(4)},
    }
    return params


def _basic_block_fwd(x, p, stride):
    out = conv_bn(x, p["w1"], p["bn1"], stride, 1, relu=True)
    if "wd" in p:
        identity = conv_bn(x, p["wd"], p["bnd"], stride, 0, relu=False)
    else:
        identity = x
    out = conv_bn(out, p["w2"], p["bn2"], 1, 1, relu=True, residual=identity)
    return out


def _res_layer_fwd(x, blocks, stride):
    x = _basic_block_fwd(x, blocks[0], stride)
    x = _basic_block_fwd(x, blocks[1], 1)
    return x


def _upsample_block_fwd(x, p):
    x = conv_bn(x, p["w3"], p["bn3"], 1, 1, relu=True)   # ConvReLU 3x3
    x = deconv_bn(x, p["wup"], p["bnup"])                 # deconv + BN (no ReLU)
    x = conv_bn(x, p["w1"], p["bn1"], 1, 0, relu=True)    # ConvReLU 1x1
    return x


def unet_forward(params, x_nchw):
    x = jnp.transpose(x_nchw, (0, 2, 3, 1)).astype(jnp.float32)   # -> NHWC

    x = conv_bn(x, params["input"]["w"], params["input"]["bn"], 2, 3, relu=True)
    l1 = _res_layer_fwd(x, params["layer1"], 1)
    l2 = _res_layer_fwd(l1, params["layer2"], 2)
    l3 = _res_layer_fwd(l2, params["layer3"], 2)
    l4 = _res_layer_fwd(l3, params["layer4"], 2)

    c = conv_bn(l4, params["center"]["w3"], params["center"]["bn3"], 2, 1, relu=True)
    c = conv_bn(c, params["center"]["w1"], params["center"]["bn1"], 1, 0, relu=True)

    up4 = _upsample_block_fwd(c, params["dec0"])
    up3 = _upsample_block_fwd(jnp.concatenate([up4, l4], axis=-1), params["dec1"])
    up2 = _upsample_block_fwd(jnp.concatenate([up3, l3], axis=-1), params["dec2"])
    up1 = _upsample_block_fwd(jnp.concatenate([up2, l2], axis=-1), params["dec3"])
    fin = conv_bn(jnp.concatenate([up1, l1], axis=-1),
                  params["dec4"]["w"], params["dec4"]["bn"], 1, 1, relu=True)

    fin = conv_bn(fin, params["finish"]["w"], params["finish"]["bn"], 1, 1, relu=True)
    out = conv_bn(fin, params["out"]["w"], params["out"]["bn"], 1, 0, relu=True)

    return jnp.transpose(out, (0, 3, 1, 2))   # back to NCHW


if __name__ == "__main__":
    params = init_params()
    x = jax.random.normal(jax.random.PRNGKey(0), (2, 3, 64, 64), jnp.float32)
    out = unet_forward(params, x)
    out = jax.block_until_ready(out)
    assert out.shape == (2, 4, 32, 32), out.shape
    assert bool(jnp.all(jnp.isfinite(out)))
    print("KERNEL_OK")
</pallas_src>

<mosaic_0001>
module attributes {stable_mosaic.version = 11 : i64} {
  func.func @_matmul_kernel(%arg0: i32, %arg1: i32, %arg2: i32, %arg3: memref<256x147xbf16, #tpu.memory_space<vmem>>, %arg4: memref<147x64xbf16, #tpu.memory_space<vmem>>, %arg5: memref<256x64xf32, #tpu.memory_space<vmem>>, %arg6: memref<1x1x64xf32, #tpu.memory_space<vmem>>, %arg7: memref<1x1x64xf32, #tpu.memory_space<vmem>>, %arg8: memref<256x64xf32, #tpu.memory_space<vmem>>) attributes {dimension_semantics = [#tpu.dimension_semantics<parallel>, #tpu.dimension_semantics<parallel>, #tpu.dimension_semantics<arbitrary>], iteration_bounds = array<i64: 8, 1, 1>, scalar_prefetch = 0 : i64, scratch_operands = 1 : i64, tpu.core_type = #tpu.core_type<tc>, window_params = [{transform_indices = @transform_0, window_bounds = array<i64: 256, 147>}, {transform_indices = @transform_1, window_bounds = array<i64: 147, 64>}, {transform_indices = @transform_2, window_bounds = array<i64: 256, 64>}, {transform_indices = @transform_3, window_bounds = array<i64: 1, 1, 64>}, {transform_indices = @transform_4, window_bounds = array<i64: 1, 1, 64>}]} {
    %c0_i32 = arith.constant 0 : i32
    %0 = arith.cmpi eq, %arg2, %c0_i32 : i32
    %1 = arith.extui %0 : i1 to i32
    %c0_i32_0 = arith.constant 0 : i32
    %2 = arith.cmpi ne, %1, %c0_i32_0 : i32
    scf.if %2 {
      %cst_10 = arith.constant 0.000000e+00 : f32
      %12 = vector.broadcast %cst_10 : f32 to vector<256x64xf32>
      %c0_11 = arith.constant 0 : index
      %c0_12 = arith.constant 0 : index
      %13 = vector.load %arg8[%c0_11, %c0_12] : memref<256x64xf32, #tpu.memory_space<vmem>>, vector<256x64xf32>
      tpu.vector_store %arg8[%c0_11, %c0_12], %12 {strides = array<i32>} : memref<256x64xf32, #tpu.memory_space<vmem>>, vector<256x64xf32>,
    } else {
    }
    %c0 = arith.constant 0 : index
    %c0_1 = arith.constant 0 : index
    %3 = vector.load %arg8[%c0, %c0_1] : memref<256x64xf32, #tpu.memory_space<vmem>>, vector<256x64xf32>
    %c0_2 = arith.constant 0 : index
    %c0_3 = arith.constant 0 : index
    %4 = vector.load %arg3[%c0_2, %c0_3] : memref<256x147xbf16, #tpu.memory_space<vmem>>, vector<256x147xbf16>
    %c0_4 = arith.constant 0 : index
    %c0_5 = arith.constant 0 : index
    %5 = vector.load %arg4[%c0_4, %c0_5] : memref<147x64xbf16, #tpu.memory_space<vmem>>, vector<147x64xbf16>
    %cst = arith.constant dense<0.000000e+00> : vector<256x64xf32>
    %6 = tpu.matmul %4, %5, %cst {dimension_numbers = #tpu.dot_dimension_numbers<[1], [0], [0], [1], [0, 0, 1, 1], [], []>} : vector<256x147xbf16>, vector<147x64xbf16>, vector<256x64xf32> -> vector<256x64xf32>
    %7 = arith.addf %3, %6 : vector<256x64xf32>
    %c0_6 = arith.constant 0 : index
    %c0_7 = arith.constant 0 : index
    %8 = vector.load %arg8[%c0_6, %c0_7] : memref<256x64xf32, #tpu.memory_space<vmem>>, vector<256x64xf32>
    tpu.vector_store %arg8[%c0_6, %c0_7], %7 {strides = array<i32>} : memref<256x64xf32, #tpu.memory_space<vmem>>, vector<256x64xf32>,
    %c0_i32_8 = arith.constant 0 : i32
    %9 = arith.cmpi eq, %arg2, %c0_i32_8 : i32
    %10 = arith.extui %9 : i1 to i32
    %c0_i32_9 = arith.constant 0 : i32
    %11 = arith.cmpi ne, %10, %c0_i32_9 : i32
    scf.if %11 {
      %c0_10 = arith.constant 0 : index
      %c0_11 = arith.constant 0 : index
      %12 = vector.load %arg8[%c0_10, %c0_11] : memref<256x64xf32, #tpu.memory_space<vmem>>, vector<256x64xf32>
      %c0_12 = arith.constant 0 : index
      %c0_13 = arith.constant 0 : index
      %13 = vector.load %arg5[%c0_12, %c0_13] : memref<256x64xf32, #tpu.memory_space<vmem>>, vector<256x64xf32>
      tpu.vector_store %arg5[%c0_12, %c0_13], %12 {strides = array<i32>} : memref<256x64xf32, #tpu.memory_space<vmem>>, vector<256x64xf32>,
      %cst_14 = arith.constant dense<0.000000e+00> : vector<64xf32>
      %14 = vector.multi_reduction <add>, %12, %cst_14 [0] : vector<256x64xf32> to vector<64xf32>
      %15 = vector.shape_cast %14 : vector<64xf32> to vector<1x64xf32>
      %16 = vector.shape_cast %15 : vector<1x64xf32> to vector<1x1x64xf32>
      %c0_15 = arith.constant 0 : index
      %c0_16 = arith.constant 0 : index
      %c0_17 = arith.constant 0 : index
      %17 = vector.load %arg6[%c0_15, %c0_16, %c0_17] : memref<1x1x64xf32, #tpu.memory_space<vmem>>, vector<1x1x64xf32>
      tpu.vector_store %arg6[%c0_15, %c0_16, %c0_17], %16 {strides = array<i32>} : memref<1x1x64xf32, #tpu.memory_space<vmem>>, vector<1x1x64xf32>,
      %18 = arith.mulf %12, %12 : vector<256x64xf32>
      %cst_18 = arith.constant dense<0.000000e+00> : vector<64xf32>
      %19 = vector.multi_reduction <add>, %18, %cst_18 [0] : vector<256x64xf32> to vector<64xf32>
      %20 = vector.shape_cast %19 : vector<64xf32> to vector<1x64xf32>
      %21 = vector.shape_cast %20 : vector<1x64xf32> to vector<1x1x64xf32>
      %c0_19 = arith.constant 0 : index
      %c0_20 = arith.constant 0 : index
      %c0_21 = arith.constant 0 : index
      %22 = vector.load %arg7[%c0_19, %c0_20, %c0_21] : memref<1x1x64xf32, #tpu.memory_space<vmem>>, vector<1x1x64xf32>
      tpu.vector_store %arg7[%c0_19, %c0_20, %c0_21], %21 {strides = array<i32>} : memref<1x1x64xf32, #tpu.memory_space<vmem>>, vector<1x1x64xf32>,
    } else {
    }
    return
  }
  func.func @transform_0(%arg0: i32, %arg1: i32, %arg2: i32) -> (i32, i32) {
    %c0_i32 = arith.constant 0 : i32
    return %arg0, %arg2 : i32, i32
  }
  func.func @transform_1(%arg0: i32, %arg1: i32, %arg2: i32) -> (i32, i32) {
    %c0_i32 = arith.constant 0 : i32
    return %arg2, %arg1 : i32, i32
  }
  func.func @transform_2(%arg0: i32, %arg1: i32, %arg2: i32) -> (i32, i32) {
    %c0_i32 = arith.constant 0 : i32
    return %arg0, %arg1 : i32, i32
  }
  func.func @transform_3(%arg0: i32, %arg1: i32, %arg2: i32) -> (i32, i32, i32) {
    %c0_i32 = arith.constant 0 : i32
    %c0_i32_0 = arith.constant 0 : i32
    return %arg0, %c0_i32, %arg1 : i32, i32, i32
  }
  func.func @transform_4(%arg0: i32, %arg1: i32, %arg2: i32) -> (i32, i32, i32) {
    %c0_i32 = arith.constant 0 : i32
    %c0_i32_0 = arith.constant 0 : i32
    return %arg0, %c0_i32, %arg1 : i32, i32, i32
  }
}

</mosaic_0001>

<llo_original>
// kernel: tpu_custom_call.1
$region0: #{tpu_custom_call.1}
  #allocation0 [shape = 'u32[]', space=smem, size = 0x4, offset = 0x4, fixed_abs, tag = 'smem constant byte address 0x4 - core index']
  #allocation1 [shape = 'u32[72,128]{1,0:T(1,128)}', space=vmem, size = 0x9000, scoped, tag = 'internal scratch']
  #allocation2 [shape = 'f32[256,64]{1,0:T(8,128)}', space=vmem, size = 0x20000, scoped, tag = 'scratch operand']
  %s0 = inlined_call_operand.vmem [shape: bf16[2048,147], index: 0, kind: input, shape index: {}]
  %s1 = inlined_call_operand.vmem [shape: bf16[147,64], index: 1, kind: input, shape index: {}]
  %s2 = inlined_call_operand.vmem [shape: f32[2048,64], index: 2, kind: output, shape index: {0}]
  %s3 = inlined_call_operand.hbm [shape: f32[8,1,64], index: 3, kind: output, shape index: {1}]
  %s4 = inlined_call_operand.hbm [shape: f32[8,1,64], index: 4, kind: output, shape index: {2}]
  %5 = xla_tuple %s2, %s3, %s4
  %s6 = sld [smem:[#allocation0]]
  $region65: #{tpu_custom_call.1} parent=0
    _
  %s8 = ssub.s32 1, %s6
  %s9 = scalar_select 0, %s8, %s6
  $region1: #{tpu_custom_call.1} parent=0
    #allocation3 [shape = 'u8[1024]{0}', space=vmem, size = 0x400, scoped, tag = 'output window, operand 1']
    #allocation4 [shape = 's32[2]{0}', space=sflag, size = 0x8, scoped, tag = 'scoped memory for tpu_custom_call.1']
    #allocation5 [shape = 'u8[1024]{0}', space=vmem, size = 0x400, scoped, tag = 'output window, operand 2']
    #allocation6 [shape = 's32[2]{0}', space=sflag, size = 0x8, scoped, tag = 'scoped memory for tpu_custom_call.1']
    %10 = vsyncpa [#allocation4], 0
    %s11 = scalar_lea.sflag [#allocation4], 1
    %12 = vsyncpa %s11, 0
    %13 = vsyncpa [#allocation6], 0
    %s14 = scalar_lea.sflag [#allocation6], 1
    %15 = vsyncpa %s14, 0
    loop: start=0, step=1, limit=10
    $region2: #{tpu_custom_call.1} parent=1 // loop_pre_header
      _
    $region3: #{tpu_custom_call.1} parent=1 // loop_header
      %s17 = sphi 0, %s21
      %p18 = scmp.ge.s32.totalorder %s17, 10
      %s24 = sphi 0, %s43
      %s25 = sphi 0, %s39
      %s26 = sphi 0, %s35
      %s27 = sphi 0, %s24
      %s28 = sphi 0, %s25
      %s29 = sphi 0, %s26
      %s30 = sphi 0, %s27
      %s31 = sphi 0, %s28
      %s32 = sphi 0, %s29
      %s48 = sphi 0, %s50
      %s51 = sphi 0, %s48
      %s52 = sphi 0, %s51
      %s68 = sphi 0, %s52
      %s76 = sphi 0, %s78
      %s79 = sphi 0, %s76
      %s80 = sphi 0, %s79
      %s96 = sphi 0, %s80
      %s104 = sphi 0, %s106
      %s107 = sphi 0, %s104
      %s108 = sphi 0, %s107
      %s124 = sphi 0, %s108
      %s132 = sphi 0, %s134
      %s135 = sphi 0, %s132
      %s136 = sphi 0, %s135
      %s152 = sphi 0, %s136
      %s160 = sphi 0, %s162
      %s163 = sphi 0, %s160
      %s164 = sphi 0, %s163
      %s180 = sphi 0, %s164
    $region4: #{tpu_custom_call.1} parent=1 // loop_header_branch
      %20 = sbr.rel (%p18) target = $region8
    $region5: #{tpu_custom_call.1} parent=1 // loop_body
      %s22 = ssub.s32 %s17, 1
      %s23 = ssub.s32 %s17, 2
      %s33 = sadd.s32 1, %s26
      %p34 = scmp.ge.s32.totalorder %s33, 1
      %s35 = scalar_select %p34, 0, %s33
      %s36 = sadd.s32 1, %s25
      %s37 = scalar_select %p34, %s36, %s25
      %p38 = scmp.ge.s32.totalorder %s37, 1
      %s39 = scalar_select %p38, 0, %s37
      %s40 = sadd.s32 1, %s24
      %s41 = scalar_select %p38, %s40, %s24
      %p42 = scmp.ge.s32.totalorder %s41, 8
      %s43 = scalar_select %p42, 0, %s41
      %s44 = ssub.s32 %s24, %s43
      %s45 = ssub.s32 %s26, %s35
      %s46 = sor.u32 %s44, %s45
      %p47 = scmp.eq.s32.totalorder %s46, 0
      %s49 = sadd.s32 %s48, 1
      %s50 = scalar_select %p47, %s48, %s49
      %p53 = pneg %p47
      %p54 = scmp.eq.s32.totalorder %s17, 7
      %p55 = por %p53, %p54
      %p56 = scmp.ne.s32.totalorder %s48, %s51
      %p57 = scmp.eq.s32.totalorder %s17, 0
      %p58 = por %p56, %p57
      %p59 = scmp.ne.s32.totalorder %s48, %s51
      %p60 = scmp.eq.s32.totalorder %s22, 7
      %p61 = por %p59, %p60
      %p62 = scmp.ne.s32.totalorder %s51, %s52
      %p63 = scmp.eq.s32.totalorder %s22, 0
      %p64 = por %p62, %p63
      %p65 = scmp.ne.s32.totalorder %s51, %s52
      %p66 = scmp.eq.s32.totalorder %s23, 7
      %p67 = por %p65, %p66
      %p69 = scmp.ne.s32.totalorder %s52, %s68
      %p70 = scmp.eq.s32.totalorder %s23, 0
      %p71 = por %p69, %p70
      %s72 = ssub.s32 %s26, %s35
      %s73 = ssub.s32 %s25, %s39
      %s74 = sor.u32 %s72, %s73
      %p75 = scmp.eq.s32.totalorder %s74, 0
      %s77 = sadd.s32 %s76, 1
      %s78 = scalar_select %p75, %s76, %s77
      %p81 = pneg %p75
      %p82 = scmp.eq.s32.totalorder %s17, 7
      %p83 = por %p81, %p82
      %p84 = scmp.ne.s32.totalorder %s76, %s79
      %p85 = scmp.eq.s32.totalorder %s17, 0
      %p86 = por %p84, %p85
      %p87 = scmp.ne.s32.totalorder %s76, %s79
      %p88 = scmp.eq.s32.totalorder %s22, 7
      %p89 = por %p87, %p88
      %p90 = scmp.ne.s32.totalorder %s79, %s80
      %p91 = scmp.eq.s32.totalorder %s22, 0
      %p92 = por %p90, %p91
      %p93 = scmp.ne.s32.totalorder %s79, %s80
      %p94 = scmp.eq.s32.totalorder %s23, 7
      %p95 = por %p93, %p94
      %p97 = scmp.ne.s32.totalorder %s80, %s96
      %p98 = scmp.eq.s32.totalorder %s23, 0
      %p99 = por %p97, %p98
      %s100 = ssub.s32 %s24, %s43
      %s101 = ssub.s32 %s25, %s39
      %s102 = sor.u32 %s100, %s101
      %p103 = scmp.eq.s32.totalorder %s102, 0
      %s105 = sadd.s32 %s104, 1
      %s106 = scalar_select %p103, %s104, %s105
      %p109 = pneg %p103
      %p110 = scmp.eq.s32.totalorder %s17, 7
      %p111 = por %p109, %p110
      %p112 = scmp.ne.s32.totalorder %s104, %s107
      %p113 = scmp.eq.s32.totalorder %s17, 0
      %p114 = por %p112, %p113
      %p115 = scmp.ne.s32.totalorder %s104, %s107
      %p116 = scmp.eq.s32.totalorder %s22, 7
      %p117 = por %p115, %p116
      %p118 = scmp.ne.s32.totalorder %s107, %s108
      %p119 = scmp.eq.s32.totalorder %s22, 0
      %p120 = por %p118, %p119
      %p121 = scmp.ne.s32.totalorder %s107, %s108
      %p122 = scmp.eq.s32.totalorder %s23, 7
      %p123 = por %p121, %p122
      %p125 = scmp.ne.s32.totalorder %s108, %s124
      %p126 = scmp.eq.s32.totalorder %s23, 0
      %p127 = por %p125, %p126
      %s128 = ssub.s32 %s24, %s43
      %s129 = ssub.s32 %s25, %s39
      %s130 = sor.u32 %s128, %s129
      %p131 = scmp.eq.s32.totalorder %s130, 0
      %s133 = sadd.s32 %s132, 1
      %s134 = scalar_select %p131, %s132, %s133
      %p137 = pneg %p131
      %p138 = scmp.eq.s32.totalorder %s17, 7
      %p139 = por %p137, %p138
      %p140 = scmp.ne.s32.totalorder %s132, %s135
      %p141 = scmp.eq.s32.totalorder %s17, 0
      %p142 = por %p140, %p141
      %p143 = scmp.ne.s32.totalorder %s132, %s135
      %p144 = scmp.eq.s32.totalorder %s22, 7
      %p145 = por %p143, %p144
      %p146 = scmp.ne.s32.totalorder %s135, %s136
      %p147 = scmp.eq.s32.totalorder %s22, 0
      %p148 = por %p146, %p147
      %p149 = scmp.ne.s32.totalorder %s135, %s136
      %p150 = scmp.eq.s32.totalorder %s23, 7
      %p151 = por %p149, %p150
      %p153 = scmp.ne.s32.totalorder %s136, %s152
      %p154 = scmp.eq.s32.totalorder %s23, 0
      %p155 = por %p153, %p154
      %s156 = ssub.s32 %s24, %s43
      %s157 = ssub.s32 %s25, %s39
      %s158 = sor.u32 %s156, %s157
      %p159 = scmp.eq.s32.totalorder %s158, 0
      %s161 = sadd.s32 %s160, 1
      %s162 = scalar_select %p159, %s160, %s161
      %p165 = pneg %p159
      %p166 = scmp.eq.s32.totalorder %s17, 7
      %p167 = por %p165, %p166
      %p168 = scmp.ne.s32.totalorder %s160, %s163
      %p169 = scmp.eq.s32.totalorder %s17, 0
      %p170 = por %p168, %p169
      %p171 = scmp.ne.s32.totalorder %s160, %s163
      %p172 = scmp.eq.s32.totalorder %s22, 7
      %p173 = por %p171, %p172
      %p174 = scmp.ne.s32.totalorder %s163, %s164
      %p175 = scmp.eq.s32.totalorder %s22, 0
      %p176 = por %p174, %p175
      %p177 = scmp.ne.s32.totalorder %s163, %s164
      %p178 = scmp.eq.s32.totalorder %s23, 7
      %p179 = por %p177, %p178
      %p181 = scmp.ne.s32.totalorder %s164, %s180
      %p182 = scmp.eq.s32.totalorder %s23, 0
      %p183 = por %p181, %p182
      %p184 = scmp.le.s32.totalorder 1, %s17
      %p185 = scmp.lt.s32.totalorder %s17, 9
      %p186 = pnand %p184, %p185
      %p187 = pneg %p186
      // Predicated region
      $region9: #{tpu_custom_call.1} parent=5 // pred_check
        _
      $region10: #{tpu_custom_call.1} parent=5 // pred_check_branch
        %189 = sbr.rel (%p186) target = $region12
      $region11: #{tpu_custom_call.1} parent=5 // pred_region
        %s190 = ssub.s32 %s17, 1
        // Predicated region
        $region13: #{tpu_custom_call.1} parent=11 // pred_check
          %p191 = pneg %p92
        $region14: #{tpu_custom_call.1} parent=11 // pred_check_branch
          %193 = sbr.rel (%p191) target = $region16
        $region15: #{tpu_custom_call.1} parent=11 // pred_region
          %s194 = smul.u32 19, %s29
          %p195 = scmp.lt.s32.totalorder %s194, 18
          %s196 = scalar_select %p195, %s194, 18
          %p197 = scmp.lt.s32.totalorder %s28, 0
          %s198 = scalar_select %p197, %s28, 0
          %s199 = sadd.s32 %s198, %s196
          %s200 = smul.addr %s199, 4
          %s201 = scalar_lea.vmem %s1, %s200
          %s202 = smul.u32 19, %s29
        $region16: #{tpu_custom_call.1} parent=11 // pred_fallthru
          _
      $region12: #{tpu_custom_call.1} parent=5 // pred_fallthru
        _
      %p203 = scmp.lt.s32.totalorder %s17, 8
      // Predicated region
      $region17: #{tpu_custom_call.1} parent=5 // pred_check
        %p204 = pneg %p203
      $region18: #{tpu_custom_call.1} parent=5 // pred_check_branch
        %206 = sbr.rel (%p204) target = $region20
      $region19: #{tpu_custom_call.1} parent=5 // pred_region
        // Predicated region
        $region21: #{tpu_custom_call.1} parent=19 // pred_check
          %p207 = pneg %p58
        $region22: #{tpu_custom_call.1} parent=19 // pred_check_branch
          %209 = sbr.rel (%p207) target = $region24
        $region23: #{tpu_custom_call.1} parent=19 // pred_region
          %s210 = smul.u32 32, %s24
          %s211 = smul.u32 2, %s26
          %p212 = scmp.lt.s32.totalorder %s210, 255
          %s213 = scalar_select %p212, %s210, 255
          %p214 = scmp.lt.s32.totalorder %s211, 1
          %s215 = scalar_select %p214, %s211, 1
          %s216 = smul.addr %s213, 2
          %s217 = sadd.s32 %s215, %s216
          %s218 = smul.addr %s217, 4
          %s219 = scalar_lea.vmem %s0, %s218
          %s220 = smul.u32 32, %s24
          %s221 = smul.u32 2, %s26
        $region24: #{tpu_custom_call.1} parent=19 // pred_fallthru
          _
      $region20: #{tpu_custom_call.1} parent=5 // pred_fallthru
        _
      %p222 = scmp.le.s32.totalorder 1, %s17
      %p223 = scmp.lt.s32.totalorder %s17, 9
      %p224 = pnand %p222, %p223
      %p225 = pneg %p224
      // Predicated region
      $region25: #{tpu_custom_call.1} parent=5 // pred_check
        _
      $region26: #{tpu_custom_call.1} parent=5 // pred_check_branch
        %227 = sbr.rel (%p224) target = $region28
      $region27: #{tpu_custom_call.1} parent=5 // pred_region
        %s228 = ssub.s32 %s17, 1
        %s229 = smul.u32 32, %s27
        %s230 = smul.u32 2, %s29
        %p231 = scmp.lt.s32.totalorder %s229, 255
        %s232 = scalar_select %p231, %s229, 255
        %p233 = scmp.lt.s32.totalorder %s230, 1
        %s234 = scalar_select %p233, %s230, 1
        %s235 = smul.addr %s232, 2
        %s236 = sadd.s32 %s234, %s235
        %s237 = smul.addr %s236, 4
        %s238 = scalar_lea.vmem %s0, %s237
        %p239 = pneg %p64
        %p240 = pneg %p61
        %s241 = smul.u32 19, %s29
        %p242 = scmp.lt.s32.totalorder %s241, 18
        %s243 = scalar_select %p242, %s241, 18
        %p244 = scmp.lt.s32.totalorder %s28, 0
        %s245 = scalar_select %p244, %s28, 0
        %s246 = sadd.s32 %s245, %s243
        %s247 = smul.addr %s246, 4
        %s248 = scalar_lea.vmem %s1, %s247
        %p249 = pneg %p92
        %p250 = pneg %p89
        %p251 = pneg %p120
        %p252 = pneg %p117
        %s253 = smul.u32 32, %s27
        %p254 = scmp.lt.s32.totalorder %s253, 255
        %s255 = scalar_select %p254, %s253, 255
        %p256 = scmp.lt.s32.totalorder %s28, 0
        %s257 = scalar_select %p256, %s28, 0
        %s258 = sadd.s32 %s257, %s255
        %s259 = smul.addr %s258, 8
        %s260 = scalar_lea.vmem %s2, %s259
        %p261 = pneg %p148
        %p262 = pneg %p145
        %s263 = sand.u32 %s135, 1
        %s264 = scalar_lea.sflag [#allocation4], %s263
        %s265 = sand.u32 %s135, 1
        %s266 = scalar_lea.vmem [#allocation3], %s265
        %p267 = pneg %p176
        %p268 = pneg %p173
        %s269 = sand.u32 %s163, 1
        %s270 = scalar_lea.sflag [#allocation6], %s269
        %s271 = sand.u32 %s163, 1
        %s272 = scalar_lea.vmem [#allocation5], %s271
        %s273 = smul.u32 32, %s27
        %s274 = smul.u32 2, %s29
        %p275 = scmp.lt.s32.totalorder %s273, 255
        %s276 = scalar_select %p275, %s273, 255
        %p277 = scmp.lt.s32.totalorder %s274, 1
        %s278 = scalar_select %p277, %s274, 1
        %s279 = smul.addr %s276, 2
        %s280 = sadd.s32 %s278, %s279
        %s281 = smul.addr %s280, 4
        %s282 = scalar_lea.vmem %s0, %s281
        %s283 = smul.u32 32, %s27
        %s284 = smul.u32 2, %s29
        %s285 = smul.u32 19, %s29
        %p286 = scmp.lt.s32.totalorder %s285, 18
        %s287 = scalar_select %p286, %s285, 18
        %p288 = scmp.lt.s32.totalorder %s28, 0
        %s289 = scalar_select %p288, %s28, 0
        %s290 = sadd.s32 %s289, %s287
        %s291 = smul.addr %s290, 4
        %s292 = scalar_lea.vmem %s1, %s291
        %s293 = smul.u32 19, %s29
        %s294 = smul.u32 32, %s27
        %p295 = scmp.lt.s32.totalorder %s294, 255
        %s296 = scalar_select %p295, %s294, 255
        %p297 = scmp.lt.s32.totalorder %s28, 0
        %s298 = scalar_select %p297, %s28, 0
        %s299 = sadd.s32 %s298, %s296
        %s300 = smul.addr %s299, 8
        %s301 = scalar_lea.vmem %s2, %s300
        %s302 = smul.u32 32, %s27
        %p304 = scmp.eq.s32.totalorder %s29, 0
        // Predicated region
        $region29: #{tpu_custom_call.1} parent=27 // pred_check
          %p305 = pneg %p304
        $region30: #{tpu_custom_call.1} parent=27 // pred_check_branch
          %307 = sbr.rel (%p305) target = $region32
        $region31: #{tpu_custom_call.1} parent=27 // pred_region
          %vm308 = vcmask 523264
          %309 = vst.msk [vmem:[#allocation2] sm:$0xff] %vm308, 0.0
          %310 = vst.msk [vmem:[#allocation2 + $0x8] sm:$0xff] %vm308, 0.0
          %311 = vst.msk [vmem:[#allocation2 + $0x10] sm:$0xff] %vm308, 0.0
          %312 = vst.msk [vmem:[#allocation2 + $0x18] sm:$0xff] %vm308, 0.0
          %313 = vst.msk [vmem:[#allocation2 + $0x20] sm:$0xff] %vm308, 0.0
          %314 = vst.msk [vmem:[#allocation2 + $0x28] sm:$0xff] %vm308, 0.0
          %315 = vst.msk [vmem:[#allocation2 + $0x30] sm:$0xff] %vm308, 0.0
          %316 = vst.msk [vmem:[#allocation2 + $0x38] sm:$0xff] %vm308, 0.0
          %317 = vst.msk [vmem:[#allocation2 + $0x40] sm:$0xff] %vm308, 0.0
          %318 = vst.msk [vmem:[#allocation2 + $0x48] sm:$0xff] %vm308, 0.0
          %319 = vst.msk [vmem:[#allocation2 + $0x50] sm:$0xff] %vm308, 0.0
          %320 = vst.msk [vmem:[#allocation2 + $0x58] sm:$0xff] %vm308, 0.0
          %321 = vst.msk [vmem:[#allocation2 + $0x60] sm:$0xff] %vm308, 0.0
          %322 = vst.msk [vmem:[#allocation2 + $0x68] sm:$0xff] %vm308, 0.0
          %323 = vst.msk [vmem:[#allocation2 + $0x70] sm:$0xff] %vm308, 0.0
          %324 = vst.msk [vmem:[#allocation2 + $0x78] sm:$0xff] %vm308, 0.0
          %325 = vst.msk [vmem:[#allocation2 + $0x80] sm:$0xff] %vm308, 0.0
          %326 = vst.msk [vmem:[#allocation2 + $0x88] sm:$0xff] %vm308, 0.0
          %327 = vst.msk [vmem:[#allocation2 + $0x90] sm:$0xff] %vm308, 0.0
          %328 = vst.msk [vmem:[#allocation2 + $0x98] sm:$0xff] %vm308, 0.0
          %329 = vst.msk [vmem:[#allocation2 + $0xa0] sm:$0xff] %vm308, 0.0
          %330 = vst.msk [vmem:[#allocation2 + $0xa8] sm:$0xff] %vm308, 0.0
          %331 = vst.msk [vmem:[#allocation2 + $0xb0] sm:$0xff] %vm308, 0.0
          %332 = vst.msk [vmem:[#allocation2 + $0xb8] sm:$0xff] %vm308, 0.0
          %333 = vst.msk [vmem:[#allocation2 + $0xc0] sm:$0xff] %vm308, 0.0
          %334 = vst.msk [vmem:[#allocation2 + $0xc8] sm:$0xff] %vm308, 0.0
          %335 = vst.msk [vmem:[#allocation2 + $0xd0] sm:$0xff] %vm308, 0.0
          %336 = vst.msk [vmem:[#allocation2 + $0xd8] sm:$0xff] %vm308, 0.0
          %337 = vst.msk [vmem:[#allocation2 + $0xe0] sm:$0xff] %vm308, 0.0
          %338 = vst.msk [vmem:[#allocation2 + $0xe8] sm:$0xff] %vm308, 0.0
          %339 = vst.msk [vmem:[#allocation2 + $0xf0] sm:$0xff] %vm308, 0.0
          %340 = vst.msk [vmem:[#allocation2 + $0xf8] sm:$0xff] %vm308, 0.0
        $region32: #{tpu_custom_call.1} parent=27 // pred_fallthru
          _
        %v341 = vld [vmem:[#allocation2] sm:$0xff]
        %v342 = vld [vmem:[#allocation2 + $0x8] sm:$0xff]
        %v343 = vld [vmem:[#allocation2 + $0x10] sm:$0xff]
        %v344 = vld [vmem:[#allocation2 + $0x18] sm:$0xff]
        %v345 = vld [vmem:[#allocation2 + $0x20] sm:$0xff]
        %v346 = vld [vmem:[#allocation2 + $0x28] sm:$0xff]
        %v347 = vld [vmem:[#allocation2 + $0x30] sm:$0xff]
        %v348 = vld [vmem:[#allocation2 + $0x38] sm:$0xff]
        %v349 = vld [vmem:[#allocation2 + $0x40] sm:$0xff]
        %v350 = vld [vmem:[#allocation2 + $0x48] sm:$0xff]
        %v351 = vld [vmem:[#allocation2 + $0x50] sm:$0xff]
        %v352 = vld [vmem:[#allocation2 + $0x58] sm:$0xff]
        %v353 = vld [vmem:[#allocation2 + $0x60] sm:$0xff]
        %v354 = vld [vmem:[#allocation2 + $0x68] sm:$0xff]
        %v355 = vld [vmem:[#allocation2 + $0x70] sm:$0xff]
        %v356 = vld [vmem:[#allocation2 + $0x78] sm:$0xff]
        %v357 = vld [vmem:[#allocation2 + $0x80] sm:$0xff]
        %v358 = vld [vmem:[#allocation2 + $0x88] sm:$0xff]
        %v359 = vld [vmem:[#allocation2 + $0x90] sm:$0xff]
        %v360 = vld [vmem:[#allocation2 + $0x98] sm:$0xff]
        %v361 = vld [vmem:[#allocation2 + $0xa0] sm:$0xff]
        %v362 = vld [vmem:[#allocation2 + $0xa8] sm:$0xff]
        %v363 = vld [vmem:[#allocation2 + $0xb0] sm:$0xff]
        %v364 = vld [vmem:[#allocation2 + $0xb8] sm:$0xff]
        %v365 = vld [vmem:[#allocation2 + $0xc0] sm:$0xff]
        %v366 = vld [vmem:[#allocation2 + $0xc8] sm:$0xff]
        %v367 = vld [vmem:[#allocation2 + $0xd0] sm:$0xff]
        %v368 = vld [vmem:[#allocation2 + $0xd8] sm:$0xff]
        %v369 = vld [vmem:[#allocation2 + $0xe0] sm:$0xff]
        %v370 = vld [vmem:[#allocation2 + $0xe8] sm:$0xff]
        %v371 = vld [vmem:[#allocation2 + $0xf0] sm:$0xff]
        %v372 = vld [vmem:[#allocation2 + $0xf8] sm:$0xff]
        %v373 = vld [vmem:[%s282] sm:$0xff]
        %v374 = vld [vmem:[%s282 + $0x8] sm:$0xff]
        %v375 = vld [vmem:[%s282 + $0x10] sm:$0xff]
        %v376 = vld [vmem:[%s282 + $0x18] sm:$0xff]
        %v377 = vld [vmem:[%s282 + $0x20] sm:$0xff]
        %v378 = vld [vmem:[%s282 + $0x28] sm:$0xff]
        %v379 = vld [vmem:[%s282 + $0x30] sm:$0xff]
        %v380 = vld [vmem:[%s282 + $0x38] sm:$0xff]
        %v381 = vld [vmem:[%s282 + $0x40] sm:$0xff]
        %v382 = vld [vmem:[%s282 + $0x48] sm:$0xff]
        %v383 = vld [vmem:[%s282 + $0x50] sm:$0xff]
        %v384 = vld [vmem:[%s282 + $0x58] sm:$0xff]
        %v385 = vld [vmem:[%s282 + $0x60] sm:$0xff]
        %v386 = vld [vmem:[%s282 + $0x68] sm:$0xff]
        %v387 = vld [vmem:[%s282 + $0x70] sm:$0xff]
        %v388 = vld [vmem:[%s282 + $0x78] sm:$0xff]
        %v389 = vld [vmem:[%s282 + $0x80] sm:$0xff]
        %v390 = vld [vmem:[%s282 + $0x88] sm:$0xff]
        %v391 = vld [vmem:[%s282 + $0x90] sm:$0xff]
        %v392 = vld [vmem:[%s282 + $0x98] sm:$0xff]
        %v393 = vld [vmem:[%s282 + $0xa0] sm:$0xff]
        %v394 = vld [vmem:[%s282 + $0xa8] sm:$0xff]
        %v395 = vld [vmem:[%s282 + $0xb0] sm:$0xff]
        %v396 = vld [vmem:[%s282 + $0xb8] sm:$0xff]
        %v397 = vld [vmem:[%s282 + $0xc0] sm:$0xff]
        %v398 = vld [vmem:[%s282 + $0xc8] sm:$0xff]
        %v399 = vld [vmem:[%s282 + $0xd0] sm:$0xff]
        %v400 = vld [vmem:[%s282 + $0xd8] sm:$0xff]
        %v401 = vld [vmem:[%s282 + $0xe0] sm:$0xff]
        %v402 = vld [vmem:[%s282 + $0xe8] sm:$0xff]
        %v403 = vld [vmem:[%s282 + $0xf0] sm:$0xff]
        %v404 = vld [vmem:[%s282 + $0xf8] sm:$0xff]
        %v405 = vld [vmem:[%s292] sm:$0xf]
        %v406 = vld [vmem:[%s292 + $0x4] sm:$0xf]
        %v407 = vld [vmem:[%s292 + $0x8] sm:$0xf]
        %v408 = vld [vmem:[%s292 + $0xc] sm:$0xf]
        %v409 = vld [vmem:[%s292 + $0x10] sm:$0xf]
        %v410 = vld [vmem:[%s292 + $0x14] sm:$0xf]
        %v411 = vld [vmem:[%s292 + $0x18] sm:$0xf]
        %v412 = vld [vmem:[%s292 + $0x1c] sm:$0xf]
        %v413 = vld [vmem:[%s292 + $0x20] sm:$0xf]
        %v414 = vld [vmem:[%s292 + $0x24] sm:$0xf]
        %v415 = vld [vmem:[%s292 + $0x28] sm:$0xf]
        %v416 = vld [vmem:[%s292 + $0x2c] sm:$0xf]
        %v417 = vld [vmem:[%s292 + $0x30] sm:$0xf]
        %v418 = vld [vmem:[%s292 + $0x34] sm:$0xf]
        %v419 = vld [vmem:[%s292 + $0x38] sm:$0xf]
        %v420 = vld [vmem:[%s292 + $0x3c] sm:$0xf]
        %v421 = vld [vmem:[%s292 + $0x40] sm:$0xf]
        %v422 = vld [vmem:[%s292 + $0x44] sm:$0xf]
        %v423 = vld [vmem:[%s292 + $0x48] sm:$0x3]
        %v456 = vunpack.c.l.b16 %v373
        %v457 = vunpack.c.h.b16 %v373
        %v458 = vunpack.c.l.b16 %v374
        %v459 = vunpack.c.h.b16 %v374
        %v460 = vunpack.c.l.b16 %v375
        %v461 = vunpack.c.h.b16 %v375
        %v462 = vunpack.c.l.b16 %v376
        %v463 = vunpack.c.h.b16 %v376
        %v464 = vunpack.c.l.b16 %v377
        %v465 = vunpack.c.h.b16 %v377
        %v466 = vunpack.c.l.b16 %v378
        %v467 = vunpack.c.h.b16 %v378
        %v468 = vunpack.c.l.b16 %v379
        %v469 = vunpack.c.h.b16 %v379
        %v470 = vunpack.c.l.b16 %v380
        %v471 = vunpack.c.h.b16 %v380
        %v472 = vunpack.c.l.b16 %v381
        %v473 = vunpack.c.h.b16 %v381
        %v474 = vunpack.c.l.b16 %v382
        %v475 = vunpack.c.h.b16 %v382
        %v476 = vunpack.c.l.b16 %v383
        %v477 = vunpack.c.h.b16 %v383
        %v478 = vunpack.c.l.b16 %v384
        %v479 = vunpack.c.h.b16 %v384
        %v480 = vunpack.c.l.b16 %v385
        %v481 = vunpack.c.h.b16 %v385
        %v482 = vunpack.c.l.b16 %v386
        %v483 = vunpack.c.h.b16 %v386
        %v484 = vunpack.c.l.b16 %v387
        %v485 = vunpack.c.h.b16 %v387
        %v486 = vunpack.c.l.b16 %v388
        %v487 = vunpack.c.h.b16 %v388
        %v488 = vunpack.c.l.b16 %v389
        %v489 = vunpack.c.h.b16 %v389
        %v490 = vunpack.c.l.b16 %v390
        %v491 = vunpack.c.h.b16 %v390
        %v492 = vunpack.c.l.b16 %v391
        %v493 = vunpack.c.h.b16 %v391
        %v494 = vunpack.c.l.b16 %v392
        %v495 = vunpack.c.h.b16 %v392
        %v496 = vunpack.c.l.b16 %v393
        %v497 = vunpack.c.h.b16 %v393
        %v498 = vunpack.c.l.b16 %v394
        %v499 = vunpack.c.h.b16 %v394
        %v500 = vunpack.c.l.b16 %v395
        %v501 = vunpack.c.h.b16 %v395
        %v502 = vunpack.c.l.b16 %v396
        %v503 = vunpack.c.h.b16 %v396
        %v504 = vunpack.c.l.b16 %v397
        %v505 = vunpack.c.h.b16 %v397
        %v506 = vunpack.c.l.b16 %v398
        %v507 = vunpack.c.h.b16 %v398
        %v508 = vunpack.c.l.b16 %v399
        %v509 = vunpack.c.h.b16 %v399
        %v510 = vunpack.c.l.b16 %v400
        %v511 = vunpack.c.h.b16 %v400
        %v512 = vunpack.c.l.b16 %v401
        %v513 = vunpack.c.h.b16 %v401
        %v514 = vunpack.c.l.b16 %v402
        %v515 = vunpack.c.h.b16 %v402
        %v516 = vunpack.c.l.b16 %v403
        %v517 = vunpack.c.h.b16 %v403
        %v518 = vunpack.c.l.b16 %v404
        %v519 = vunpack.c.h.b16 %v404
        %v520 = vpack.c.b16 %v458, %v456
        %v521 = vpack.c.b16 %v459, %v457
        %v522 = vpack.c.b16 %v462, %v460
        %v523 = vpack.c.b16 %v463, %v461
        %v524 = vpack.c.b16 %v466, %v464
        %v525 = vpack.c.b16 %v467, %v465
        %v526 = vpack.c.b16 %v470, %v468
        %v527 = vpack.c.b16 %v471, %v469
        %v528 = vpack.c.b16 %v474, %v472
        %v529 = vpack.c.b16 %v475, %v473
        %v530 = vpack.c.b16 %v478, %v476
        %v531 = vpack.c.b16 %v479, %v477
        %v532 = vpack.c.b16 %v482, %v480
        %v533 = vpack.c.b16 %v483, %v481
        %v534 = vpack.c.b16 %v486, %v484
        %v535 = vpack.c.b16 %v487, %v485
        %v536 = vpack.c.b16 %v490, %v488
        %v537 = vpack.c.b16 %v491, %v489
        %v538 = vpack.c.b16 %v494, %v492
        %v539 = vpack.c.b16 %v495, %v493
        %v540 = vpack.c.b16 %v498, %v496
        %v541 = vpack.c.b16 %v499, %v497
        %v542 = vpack.c.b16 %v502, %v500
        %v543 = vpack.c.b16 %v503, %v501
        %v544 = vpack.c.b16 %v506, %v504
        %v545 = vpack.c.b16 %v507, %v505
        %v546 = vpack.c.b16 %v510, %v508
        %v547 = vpack.c.b16 %v511, %v509
        %v548 = vpack.c.b16 %v514, %v512
        %v549 = vpack.c.b16 %v515, %v513
        %v550 = vpack.c.b16 %v518, %v516
        %v551 = vpack.c.b16 %v519, %v517
        %v587 = vunpack.c.l.b16 %v405
        %v588 = vunpack.c.l.b16 %v406
        %v589 = vunpack.c.l.b16 %v407
        %v590 = vunpack.c.l.b16 %v408
        %v591 = vunpack.c.l.b16 %v409
        %v592 = vunpack.c.l.b16 %v410
        %v593 = vunpack.c.l.b16 %v411
        %v594 = vunpack.c.l.b16 %v412
        %v595 = vunpack.c.l.b16 %v413
        %v596 = vunpack.c.l.b16 %v414
        %v597 = vunpack.c.l.b16 %v415
        %v598 = vunpack.c.l.b16 %v416
        %v599 = vunpack.c.l.b16 %v417
        %v600 = vunpack.c.l.b16 %v418
        %v601 = vunpack.c.l.b16 %v419
        %v602 = vunpack.c.l.b16 %v420
        %v603 = vunpack.c.l.b16 %v421
        %v604 = vunpack.c.l.b16 %v422
        %v605 = vunpack.c.l.b16 %v423
        %v606 = vpack.c.b16 %v588, %v587
        %v607 = vpack.c.b16 %v590, %v589
        %v608 = vpack.c.b16 %v592, %v591
        %v609 = vpack.c.b16 %v594, %v593
        %v610 = vpack.c.b16 %v596, %v595
        %v611 = vpack.c.b16 %v598, %v597
        %v612 = vpack.c.b16 %v600, %v599
        %v613 = vpack.c.b16 %v602, %v601
        %v614 = vpack.c.b16 %v604, %v603
        %v615 = vpack.c.b16 %v605, %v605
        %vm625 = vcmask 154624
        %v627 = vsel %vm625, %v521, 0
        %v630 = vsel %vm625, %v523, 0
        %v633 = vsel %vm625, %v525, 0
        %v636 = vsel %vm625, %v527, 0
        %v639 = vsel %vm625, %v529, 0
        %v642 = vsel %vm625, %v531, 0
        %v645 = vsel %vm625, %v533, 0
        %v648 = vsel %vm625, %v535, 0
        %v651 = vsel %vm625, %v537, 0
        %v654 = vsel %vm625, %v539, 0
        %v657 = vsel %vm625, %v541, 0
        %v660 = vsel %vm625, %v543, 0
        %v663 = vsel %vm625, %v545, 0
        %v666 = vsel %vm625, %v547, 0
        %v669 = vsel %vm625, %v549, 0
        %v672 = vsel %vm625, %v551, 0
        %vm674 = vcmask 1040384
        %vm675 = vcmask 1041408
        %v676 = vsel %vm674, 4294967295, 65535
        %v677 = vsel %vm675, %v676, 0
        %v679 = vand.u32 %v615, %v677
        %681 = vmatpush.bf16.msra.mxu0 %v613
        %682 = vmatpush.bf16.msra.mxu0 %v612
        %683 = vmatpush.bf16.msra.mxu0 %v611
        %684 = vmatpush.bf16.msra.mxu0 %v610
        %685 = vmatpush.bf16.msra.mxu0 %v609
        %686 = vmatpush.bf16.msra.mxu0 %v608
        %687 = vmatpush.bf16.msra.mxu0 %v607
        %688 = vmatpush.bf16.msra.mxu0 %v606
        %689 = vmatmul.bf16.gmra.mxu0 %v520
        %v690 = vpop.f32.mrf.mxu0
        %v691 = vadd.f32 0.0, %v690
        %v692 = vpop.f32.mrf.mxu0
        %v693 = vadd.f32 0.0, %v692
        %694 = vmatmul.bf16.gmra.mxu0 %v522
        %v695 = vpop.f32.mrf.mxu0
        %v696 = vadd.f32 0.0, %v695
        %v697 = vpop.f32.mrf.mxu0
        %v698 = vadd.f32 0.0, %v697
        %699 = vmatmul.bf16.gmra.mxu0 %v524
        %v700 = vpop.f32.mrf.mxu0
        %v701 = vadd.f32 0.0, %v700
        %v702 = vpop.f32.mrf.mxu0
        %v703 = vadd.f32 0.0, %v702
        %704 = vmatmul.bf16.gmra.mxu0 %v526
        %v705 = vpop.f32.mrf.mxu0
        %v706 = vadd.f32 0.0, %v705
        %v707 = vpop.f32.mrf.mxu0
        %v708 = vadd.f32 0.0, %v707
        %709 = vmatmul.bf16.gmra.mxu0 %v528
        %v710 = vpop.f32.mrf.mxu0
        %v711 = vadd.f32 0.0, %v710
        %v712 = vpop.f32.mrf.mxu0
        %v713 = vadd.f32 0.0, %v712
        %714 = vmatmul.bf16.gmra.mxu0 %v530
        %v715 = vpop.f32.mrf.mxu0
        %v716 = vadd.f32 0.0, %v715
        %v717 = vpop.f32.mrf.mxu0
        %v718 = vadd.f32 0.0, %v717
        %719 = vmatmul.bf16.gmra.mxu0 %v532
        %v720 = vpop.f32.mrf.mxu0
        %v721 = vadd.f32 0.0, %v720
        %v722 = vpop.f32.mrf.mxu0
        %v723 = vadd.f32 0.0, %v722
        %724 = vmatmul.bf16.gmra.mxu0 %v534
        %v725 = vpop.f32.mrf.mxu0
        %v726 = vadd.f32 0.0, %v725
        %v727 = vpop.f32.mrf.mxu0
        %v728 = vadd.f32 0.0, %v727
        %729 = vmatmul.bf16.gmra.mxu0 %v536
        %v730 = vpop.f32.mrf.mxu0
        %v731 = vadd.f32 0.0, %v730
        %v732 = vpop.f32.mrf.mxu0
        %v733 = vadd.f32 0.0, %v732
        %734 = vmatmul.bf16.gmra.mxu0 %v538
        %v735 = vpop.f32.mrf.mxu0
        %v736 = vadd.f32 0.0, %v735
        %v737 = vpop.f32.mrf.mxu0
        %v738 = vadd.f32 0.0, %v737
        %739 = vmatmul.bf16.gmra.mxu0 %v540
        %v740 = vpop.f32.mrf.mxu0
        %v741 = vadd.f32 0.0, %v740
        %v742 = vpop.f32.mrf.mxu0
        %v743 = vadd.f32 0.0, %v742
        %744 = vmatmul.bf16.gmra.mxu0 %v542
        %v745 = vpop.f32.mrf.mxu0
        %v746 = vadd.f32 0.0, %v745
        %v747 = vpop.f32.mrf.mxu0
        %v748 = vadd.f32 0.0, %v747
        %749 = vmatmul.bf16.gmra.mxu0 %v544
        %v750 = vpop.f32.mrf.mxu0
        %v751 = vadd.f32 0.0, %v750
        %v752 = vpop.f32.mrf.mxu0
        %v753 = vadd.f32 0.0, %v752
        %754 = vmatmul.bf16.gmra.mxu0 %v546
        %v755 = vpop.f32.mrf.mxu0
        %v756 = vadd.f32 0.0, %v755
        %v757 = vpop.f32.mrf.mxu0
        %v758 = vadd.f32 0.0, %v757
        %759 = vmatmul.bf16.gmra.mxu0 %v548
        %v760 = vpop.f32.mrf.mxu0
        %v761 = vadd.f32 0.0, %v760
        %v762 = vpop.f32.mrf.mxu0
        %v763 = vadd.f32 0.0, %v762
        %764 = vmatmul.bf16.gmra.mxu0 %v550
        %v765 = vpop.f32.mrf.mxu0
        %v766 = vadd.f32 0.0, %v765
        %v767 = vpop.f32.mrf.mxu0
        %v768 = vadd.f32 0.0, %v767
        %769 = vdwg.mxu0
        %770 = vmatpush.bf16.msra.mxu0 0
        %771 = vmatpush.bf16.msra.mxu0 0
        %772 = vmatpush.bf16.msra.mxu0 0
        %773 = vmatpush.bf16.msra.mxu0 0
        %774 = vmatpush.bf16.msra.mxu0 0
        %775 = vmatpush.bf16.msra.mxu0 0
        %776 = vmatpush.bf16.msra.mxu0 %v679
        %777 = vmatpush.bf16.msra.mxu0 %v614
        %778 = vmatmul.bf16.gmra.mxu0 %v627
        %v779 = vpop.f32.mrf.mxu0
        %v780 = vadd.f32 %v691, %v779
        %v781 = vpop.f32.mrf.mxu0
        %v782 = vadd.f32 %v693, %v781
        %783 = vmatmul.bf16.gmra.mxu0 %v630
        %v784 = vpop.f32.mrf.mxu0
        %v785 = vadd.f32 %v696, %v784
        %v786 = vpop.f32.mrf.mxu0
        %v787 = vadd.f32 %v698, %v786
        %788 = vmatmul.bf16.gmra.mxu0 %v633
        %v789 = vpop.f32.mrf.mxu0
        %v790 = vadd.f32 %v701, %v789
        %v791 = vpop.f32.mrf.mxu0
        %v792 = vadd.f32 %v703, %v791
        %793 = vmatmul.bf16.gmra.mxu0 %v636
        %v794 = vpop.f32.mrf.mxu0
        %v795 = vadd.f32 %v706, %v794
        %v796 = vpop.f32.mrf.mxu0
        %v797 = vadd.f32 %v708, %v796
        %798 = vmatmul.bf16.gmra.mxu0 %v639
        %v799 = vpop.f32.mrf.mxu0
        %v800 = vadd.f32 %v711, %v799
        %v801 = vpop.f32.mrf.mxu0
        %v802 = vadd.f32 %v713, %v801
        %803 = vmatmul.bf16.gmra.mxu0 %v642
        %v804 = vpop.f32.mrf.mxu0
        %v805 = vadd.f32 %v716, %v804
        %v806 = vpop.f32.mrf.mxu0
        %v807 = vadd.f32 %v718, %v806
        %808 = vmatmul.bf16.gmra.mxu0 %v645
        %v809 = vpop.f32.mrf.mxu0
        %v810 = vadd.f32 %v721, %v809
        %v811 = vpop.f32.mrf.mxu0
        %v812 = vadd.f32 %v723, %v811
        %813 = vmatmul.bf16.gmra.mxu0 %v648
        %v814 = vpop.f32.mrf.mxu0
        %v815 = vadd.f32 %v726, %v814
        %v816 = vpop.f32.mrf.mxu0
        %v817 = vadd.f32 %v728, %v816
        %818 = vmatmul.bf16.gmra.mxu0 %v651
        %v819 = vpop.f32.mrf.mxu0
        %v820 = vadd.f32 %v731, %v819
        %v821 = vpop.f32.mrf.mxu0
        %v822 = vadd.f32 %v733, %v821
        %823 = vmatmul.bf16.gmra.mxu0 %v654
        %v824 = vpop.f32.mrf.mxu0
        %v825 = vadd.f32 %v736, %v824
        %v826 = vpop.f32.mrf.mxu0
        %v827 = vadd.f32 %v738, %v826
        %828 = vmatmul.bf16.gmra.mxu0 %v657
        %v829 = vpop.f32.mrf.mxu0
        %v830 = vadd.f32 %v741, %v829
        %v831 = vpop.f32.mrf.mxu0
        %v832 = vadd.f32 %v743, %v831
        %833 = vmatmul.bf16.gmra.mxu0 %v660
        %v834 = vpop.f32.mrf.mxu0
        %v835 = vadd.f32 %v746, %v834
        %v836 = vpop.f32.mrf.mxu0
        %v837 = vadd.f32 %v748, %v836
        %838 = vmatmul.bf16.gmra.mxu0 %v663
        %v839 = vpop.f32.mrf.mxu0
        %v840 = vadd.f32 %v751, %v839
        %v841 = vpop.f32.mrf.mxu0
        %v842 = vadd.f32 %v753, %v841
        %843 = vmatmul.bf16.gmra.mxu0 %v666
        %v844 = vpop.f32.mrf.mxu0
        %v845 = vadd.f32 %v756, %v844
        %v846 = vpop.f32.mrf.mxu0
        %v847 = vadd.f32 %v758, %v846
        %848 = vmatmul.bf16.gmra.mxu0 %v669
        %v849 = vpop.f32.mrf.mxu0
        %v850 = vadd.f32 %v761, %v849
        %v851 = vpop.f32.mrf.mxu0
        %v852 = vadd.f32 %v763, %v851
        %853 = vmatmul.bf16.gmra.mxu0 %v672
        %v854 = vpop.f32.mrf.mxu0
        %v855 = vadd.f32 %v766, %v854
        %v856 = vpop.f32.mrf.mxu0
        %v857 = vadd.f32 %v768, %v856
        %858 = vdwg.mxu0
        %v859 = vadd.f32 %v341, %v780
        %v860 = vadd.f32 %v342, %v782
        %v861 = vadd.f32 %v343, %v785
        %v862 = vadd.f32 %v344, %v787
        %v863 = vadd.f32 %v345, %v790
        %v864 = vadd.f32 %v346, %v792
        %v865 = vadd.f32 %v347, %v795
        %v866 = vadd.f32 %v348, %v797
        %v867 = vadd.f32 %v349, %v800
        %v868 = vadd.f32 %v350, %v802
        %v869 = vadd.f32 %v351, %v805
        %v870 = vadd.f32 %v352, %v807
        %v871 = vadd.f32 %v353, %v810
        %v872 = vadd.f32 %v354, %v812
        %v873 = vadd.f32 %v355, %v815
        %v874 = vadd.f32 %v356, %v817
        %v875 = vadd.f32 %v357, %v820
        %v876 = vadd.f32 %v358, %v822
        %v877 = vadd.f32 %v359, %v825
        %v878 = vadd.f32 %v360, %v827
        %v879 = vadd.f32 %v361, %v830
        %v880 = vadd.f32 %v362, %v832
        %v881 = vadd.f32 %v363, %v835
        %v882 = vadd.f32 %v364, %v837
        %v883 = vadd.f32 %v365, %v840
        %v884 = vadd.f32 %v366, %v842
        %v885 = vadd.f32 %v367, %v845
        %v886 = vadd.f32 %v368, %v847
        %v887 = vadd.f32 %v369, %v850
        %v888 = vadd.f32 %v370, %v852
        %v889 = vadd.f32 %v371, %v855
        %v890 = vadd.f32 %v372, %v857
        %vm891 = vcmask 523264
        %892 = vst.msk [vmem:[#allocation2] sm:$0xff] %vm891, %v859
        %893 = vst.msk [vmem:[#allocation2 + $0x8] sm:$0xff] %vm891, %v860
        %894 = vst.msk [vmem:[#allocation2 + $0x10] sm:$0xff] %vm891, %v861
        %895 = vst.msk [vmem:[#allocation2 + $0x18] sm:$0xff] %vm891, %v862
        %896 = vst.msk [vmem:[#allocation2 + $0x20] sm:$0xff] %vm891, %v863
        %897 = vst.msk [vmem:[#allocation2 + $0x28] sm:$0xff] %vm891, %v864
        %898 = vst.msk [vmem:[#allocation2 + $0x30] sm:$0xff] %vm891, %v865
        %899 = vst.msk [vmem:[#allocation2 + $0x38] sm:$0xff] %vm891, %v866
        %900 = vst.msk [vmem:[#allocation2 + $0x40] sm:$0xff] %vm891, %v867
        %901 = vst.msk [vmem:[#allocation2 + $0x48] sm:$0xff] %vm891, %v868
        %902 = vst.msk [vmem:[#allocation2 + $0x50] sm:$0xff] %vm891, %v869
        %903 = vst.msk [vmem:[#allocation2 + $0x58] sm:$0xff] %vm891, %v870
        %904 = vst.msk [vmem:[#allocation2 + $0x60] sm:$0xff] %vm891, %v871
        %905 = vst.msk [vmem:[#allocation2 + $0x68] sm:$0xff] %vm891, %v872
        %906 = vst.msk [vmem:[#allocation2 + $0x70] sm:$0xff] %vm891, %v873
        %907 = vst.msk [vmem:[#allocation2 + $0x78] sm:$0xff] %vm891, %v874
        %908 = vst.msk [vmem:[#allocation2 + $0x80] sm:$0xff] %vm891, %v875
        %909 = vst.msk [vmem:[#allocation2 + $0x88] sm:$0xff] %vm891, %v876
        %910 = vst.msk [vmem:[#allocation2 + $0x90] sm:$0xff] %vm891, %v877
        %911 = vst.msk [vmem:[#allocation2 + $0x98] sm:$0xff] %vm891, %v878
        %912 = vst.msk [vmem:[#allocation2 + $0xa0] sm:$0xff] %vm891, %v879
        %913 = vst.msk [vmem:[#allocation2 + $0xa8] sm:$0xff] %vm891, %v880
        %914 = vst.msk [vmem:[#allocation2 + $0xb0] sm:$0xff] %vm891, %v881
        %915 = vst.msk [vmem:[#allocation2 + $0xb8] sm:$0xff] %vm891, %v882
        %916 = vst.msk [vmem:[#allocation2 + $0xc0] sm:$0xff] %vm891, %v883
        %917 = vst.msk [vmem:[#allocation2 + $0xc8] sm:$0xff] %vm891, %v884
        %918 = vst.msk [vmem:[#allocation2 + $0xd0] sm:$0xff] %vm891, %v885
        %919 = vst.msk [vmem:[#allocation2 + $0xd8] sm:$0xff] %vm891, %v886
        %920 = vst.msk [vmem:[#allocation2 + $0xe0] sm:$0xff] %vm891, %v887
        %921 = vst.msk [vmem:[#allocation2 + $0xe8] sm:$0xff] %vm891, %v888
        %922 = vst.msk [vmem:[#allocation2 + $0xf0] sm:$0xff] %vm891, %v889
        %923 = vst.msk [vmem:[#allocation2 + $0xf8] sm:$0xff] %vm891, %v890
        // Predicated region
        $region33: #{tpu_custom_call.1} parent=27 // pred_check
          %p924 = pneg %p304
        $region34: #{tpu_custom_call.1} parent=27 // pred_check_branch
          %926 = sbr.rel (%p924) target = $region36
        $region35: #{tpu_custom_call.1} parent=27 // pred_region
          %v927 = vld [vmem:[#allocation2] sm:$0xff]
          %v928 = vld [vmem:[#allocation2 + $0x8] sm:$0xff]
          %v929 = vld [vmem:[#allocation2 + $0x10] sm:$0xff]
          %v930 = vld [vmem:[#allocation2 + $0x18] sm:$0xff]
          %v931 = vld [vmem:[#allocation2 + $0x20] sm:$0xff]
          %v932 = vld [vmem:[#allocation2 + $0x28] sm:$0xff]
          %v933 = vld [vmem:[#allocation2 + $0x30] sm:$0xff]
          %v934 = vld [vmem:[#allocation2 + $0x38] sm:$0xff]
          %v935 = vld [vmem:[#allocation2 + $0x40] sm:$0xff]
          %v936 = vld [vmem:[#allocation2 + $0x48] sm:$0xff]
          %v937 = vld [vmem:[#allocation2 + $0x50] sm:$0xff]
          %v938 = vld [vmem:[#allocation2 + $0x58] sm:$0xff]
          %v939 = vld [vmem:[#allocation2 + $0x60] sm:$0xff]
          %v940 = vld [vmem:[#allocation2 + $0x68] sm:$0xff]
          %v941 = vld [vmem:[#allocation2 + $0x70] sm:$0xff]
          %v942 = vld [vmem:[#allocation2 + $0x78] sm:$0xff]
          %v943 = vld [vmem:[#allocation2 + $0x80] sm:$0xff]
          %v944 = vld [vmem:[#allocation2 + $0x88] sm:$0xff]
          %v945 = vld [vmem:[#allocation2 + $0x90] sm:$0xff]
          %v946 = vld [vmem:[#allocation2 + $0x98] sm:$0xff]
          %v947 = vld [vmem:[#allocation2 + $0xa0] sm:$0xff]
          %v948 = vld [vmem:[#allocation2 + $0xa8] sm:$0xff]
          %v949 = vld [vmem:[#allocation2 + $0xb0] sm:$0xff]
          %v950 = vld [vmem:[#allocation2 + $0xb8] sm:$0xff]
          %v951 = vld [vmem:[#allocation2 + $0xc0] sm:$0xff]
          %v952 = vld [vmem:[#allocation2 + $0xc8] sm:$0xff]
          %v953 = vld [vmem:[#allocation2 + $0xd0] sm:$0xff]
          %v954 = vld [vmem:[#allocation2 + $0xd8] sm:$0xff]
          %v955 = vld [vmem:[#allocation2 + $0xe0] sm:$0xff]
          %v956 = vld [vmem:[#allocation2 + $0xe8] sm:$0xff]
          %v957 = vld [vmem:[#allocation2 + $0xf0] sm:$0xff]
          %v958 = vld [vmem:[#allocation2 + $0xf8] sm:$0xff]
          %959 = vst.msk [vmem:[%s301] sm:$0xff] %vm891, %v927
          %960 = vst.msk [vmem:[%s301 + $0x8] sm:$0xff] %vm891, %v928
          %961 = vst.msk [vmem:[%s301 + $0x10] sm:$0xff] %vm891, %v929
          %962 = vst.msk [vmem:[%s301 + $0x18] sm:$0xff] %vm891, %v930
          %963 = vst.msk [vmem:[%s301 + $0x20] sm:$0xff] %vm891, %v931
          %964 = vst.msk [vmem:[%s301 + $0x28] sm:$0xff] %vm891, %v932
          %965 = vst.msk [vmem:[%s301 + $0x30] sm:$0xff] %vm891, %v933
          %966 = vst.msk [vmem:[%s301 + $0x38] sm:$0xff] %vm891, %v934
          %967 = vst.msk [vmem:[%s301 + $0x40] sm:$0xff] %vm891, %v935
          %968 = vst.msk [vmem:[%s301 + $0x48] sm:$0xff] %vm891, %v936
          %969 = vst.msk [vmem:[%s301 + $0x50] sm:$0xff] %vm891, %v937
          %970 = vst.msk [vmem:[%s301 + $0x58] sm:$0xff] %vm891, %v938
          %971 = vst.msk [vmem:[%s301 + $0x60] sm:$0xff] %vm891, %v939
          %972 = vst.msk [vmem:[%s301 + $0x68] sm:$0xff] %vm891, %v940
          %973 = vst.msk [vmem:[%s301 + $0x70] sm:$0xff] %vm891, %v941
          %974 = vst.msk [vmem:[%s301 + $0x78] sm:$0xff] %vm891, %v942
          %975 = vst.msk [vmem:[%s301 + $0x80] sm:$0xff] %vm891, %v943
          %976 = vst.msk [vmem:[%s301 + $0x88] sm:$0xff] %vm891, %v944
          %977 = vst.msk [vmem:[%s301 + $0x90] sm:$0xff] %vm891, %v945
          %978 = vst.msk [vmem:[%s301 + $0x98] sm:$0xff] %vm891, %v946
          %979 = vst.msk [vmem:[%s301 + $0xa0] sm:$0xff] %vm891, %v947
          %980 = vst.msk [vmem:[%s301 + $0xa8] sm:$0xff] %vm891, %v948
          %981 = vst.msk [vmem:[%s301 + $0xb0] sm:$0xff] %vm891, %v949
          %982 = vst.msk [vmem:[%s301 + $0xb8] sm:$0xff] %vm891, %v950
          %983 = vst.msk [vmem:[%s301 + $0xc0] sm:$0xff] %vm891, %v951
          %984 = vst.msk [vmem:[%s301 + $0xc8] sm:$0xff] %vm891, %v952
          %985 = vst.msk [vmem:[%s301 + $0xd0] sm:$0xff] %vm891, %v953
          %986 = vst.msk [vmem:[%s301 + $0xd8] sm:$0xff] %vm891, %v954
          %987 = vst.msk [vmem:[%s301 + $0xe0] sm:$0xff] %vm891, %v955
          %988 = vst.msk [vmem:[%s301 + $0xe8] sm:$0xff] %vm891, %v956
          %989 = vst.msk [vmem:[%s301 + $0xf0] sm:$0xff] %vm891, %v957
          %990 = vst.msk [vmem:[%s301 + $0xf8] sm:$0xff] %vm891, %v958
          %v991 = vsel %vm891, %v927, 0.0
          %v992 = vsel %vm891, %v928, 0.0
          %v993 = vadd.f32 %v991, %v992
          %v994 = vsel %vm891, %v929, 0.0
          %v995 = vadd.f32 %v993, %v994
          %v996 = vsel %vm891, %v930, 0.0
          %v997 = vadd.f32 %v995, %v996
          %v998 = vsel %vm891, %v931, 0.0
          %v999 = vadd.f32 %v997, %v998
          %v1000 = vsel %vm891, %v932, 0.0
          %v1001 = vadd.f32 %v999, %v1000
          %v1002 = vsel %vm891, %v933, 0.0
          %v1003 = vadd.f32 %v1001, %v1002
          %v1004 = vsel %vm891, %v934, 0.0
          %v1005 = vadd.f32 %v1003, %v1004
          %v1006 = vsel %vm891, %v935, 0.0
          %v1007 = vadd.f32 %v1005, %v1006
          %v1008 = vsel %vm891, %v936, 0.0
          %v1009 = vadd.f32 %v1007, %v1008
          %v1010 = vsel %vm891, %v937, 0.0
          %v1011 = vadd.f32 %v1009, %v1010
          %v1012 = vsel %vm891, %v938, 0.0
          %v1013 = vadd.f32 %v1011, %v1012
          %v1014 = vsel %vm891, %v939, 0.0
          %v1015 = vadd.f32 %v1013, %v1014
          %v1016 = vsel %vm891, %v940, 0.0
          %v1017 = vadd.f32 %v1015, %v1016
          %v1018 = vsel %vm891, %v941, 0.0
          %v1019 = vadd.f32 %v1017, %v1018
          %v1020 = vsel %vm891, %v942, 0.0
          %v1021 = vadd.f32 %v1019, %v1020
          %v1022 = vsel %vm891, %v943, 0.0
          %v1023 = vadd.f32 %v1021, %v1022
          %v1024 = vsel %vm891, %v944, 0.0
          %v1025 = vadd.f32 %v1023, %v1024
          %v1026 = vsel %vm891, %v945, 0.0
          %v1027 = vadd.f32 %v1025, %v1026
          %v1028 = vsel %vm891, %v946, 0.0
          %v1029 = vadd.f32 %v1027, %v1028
          %v1030 = vsel %vm891, %v947, 0.0
          %v1031 = vadd.f32 %v1029, %v1030
          %v1032 = vsel %vm891, %v948, 0.0
          %v1033 = vadd.f32 %v1031, %v1032
          %v1034 = vsel %vm891, %v949, 0.0
          %v1035 = vadd.f32 %v1033, %v1034
          %v1036 = vsel %vm891, %v950, 0.0
          %v1037 = vadd.f32 %v1035, %v1036
          %v1038 = vsel %vm891, %v951, 0.0
          %v1039 = vadd.f32 %v1037, %v1038
          %v1040 = vsel %vm891, %v952, 0.0
          %v1041 = vadd.f32 %v1039, %v1040
          %v1042 = vsel %vm891, %v953, 0.0
          %v1043 = vadd.f32 %v1041, %v1042
          %v1044 = vsel %vm891, %v954, 0.0
          %v1045 = vadd.f32 %v1043, %v1044
          %v1046 = vsel %vm891, %v955, 0.0
          %v1047 = vadd.f32 %v1045, %v1046
          %v1048 = vsel %vm891, %v956, 0.0
          %v1049 = vadd.f32 %v1047, %v1048
          %v1050 = vsel %vm891, %v957, 0.0
          %v1051 = vadd.f32 %v1049, %v1050
          %v1052 = vsel %vm891, %v958, 0.0
          %v1053 = vadd.f32 %v1051, %v1052
          %v1054 = vrot.slane %v1053, 4
          %v1055 = vadd.f32 %v1053, %v1054
          %v1056 = vrot.slane %v1055, 2
          %v1057 = vadd.f32 %v1055, %v1056
          %v1058 = vrot.slane %v1057, 1
          %v1059 = vadd.f32 %v1057, %v1058
          %vm1060 = vcmask 516096
          %1061 = vst.msk [vmem:[%s266] sm:$0x1] %vm1060, %v1059
          %v1062 = vmul.f32 %v927, %v927
          %v1063 = vmul.f32 %v928, %v928
          %v1064 = vmul.f32 %v929, %v929
          %v1065 = vmul.f32 %v930, %v930
          %v1066 = vmul.f32 %v931, %v931
          %v1067 = vmul.f32 %v932, %v932
          %v1068 = vmul.f32 %v933, %v933
          %v1069 = vmul.f32 %v934, %v934
          %v1070 = vmul.f32 %v935, %v935
          %v1071 = vmul.f32 %v936, %v936
          %v1072 = vmul.f32 %v937, %v937
          %v1073 = vmul.f32 %v938, %v938
          %v1074 = vmul.f32 %v939, %v939
          %v1075 = vmul.f32 %v940, %v940
          %v1076 = vmul.f32 %v941, %v941
          %v1077 = vmul.f32 %v942, %v942
          %v1078 = vmul.f32 %v943, %v943
          %v1079 = vmul.f32 %v944, %v944
          %v1080 = vmul.f32 %v945, %v945
          %v1081 = vmul.f32 %v946, %v946
          %v1082 = vmul.f32 %v947, %v947
          %v1083 = vmul.f32 %v948, %v948
          %v1084 = vmul.f32 %v949, %v949
          %v1085 = vmul.f32 %v950, %v950
          %v1086 = vmul.f32 %v951, %v951
          %v1087 = vmul.f32 %v952, %v952
          %v1088 = vmul.f32 %v953, %v953
          %v1089 = vmul.f32 %v954, %v954
          %v1090 = vmul.f32 %v955, %v955
          %v1091 = vmul.f32 %v956, %v956
          %v1092 = vmul.f32 %v957, %v957
          %v1093 = vmul.f32 %v958, %v958
          %v1094 = vsel %vm891, %v1062, 0.0
          %v1095 = vsel %vm891, %v1063, 0.0
          %v1096 = vadd.f32 %v1094, %v1095
          %v1097 = vsel %vm891, %v1064, 0.0
          %v1098 = vadd.f32 %v1096, %v1097
          %v1099 = vsel %vm891, %v1065, 0.0
          %v1100 = vadd.f32 %v1098, %v1099
          %v1101 = vsel %vm891, %v1066, 0.0
          %v1102 = vadd.f32 %v1100, %v1101
          %v1103 = vsel %vm891, %v1067, 0.0
          %v1104 = vadd.f32 %v1102, %v1103
          %v1105 = vsel %vm891, %v1068, 0.0
          %v1106 = vadd.f32 %v1104, %v1105
          %v1107 = vsel %vm891, %v1069, 0.0
          %v1108 = vadd.f32 %v1106, %v1107
          %v1109 = vsel %vm891, %v1070, 0.0
          %v1110 = vadd.f32 %v1108, %v1109
          %v1111 = vsel %vm891, %v1071, 0.0
          %v1112 = vadd.f32 %v1110, %v1111
          %v1113 = vsel %vm891, %v1072, 0.0
          %v1114 = vadd.f32 %v1112, %v1113
          %v1115 = vsel %vm891, %v1073, 0.0
          %v1116 = vadd.f32 %v1114, %v1115
          %v1117 = vsel %vm891, %v1074, 0.0
          %v1118 = vadd.f32 %v1116, %v1117
          %v1119 = vsel %vm891, %v1075, 0.0
          %v1120 = vadd.f32 %v1118, %v1119
          %v1121 = vsel %vm891, %v1076, 0.0
          %v1122 = vadd.f32 %v1120, %v1121
          %v1123 = vsel %vm891, %v1077, 0.0
          %v1124 = vadd.f32 %v1122, %v1123
          %v1125 = vsel %vm891, %v1078, 0.0
          %v1126 = vadd.f32 %v1124, %v1125
          %v1127 = vsel %vm891, %v1079, 0.0
          %v1128 = vadd.f32 %v1126, %v1127
          %v1129 = vsel %vm891, %v1080, 0.0
          %v1130 = vadd.f32 %v1128, %v1129
          %v1131 = vsel %vm891, %v1081, 0.0
          %v1132 = vadd.f32 %v1130, %v1131
          %v1133 = vsel %vm891, %v1082, 0.0
          %v1134 = vadd.f32 %v1132, %v1133
          %v1135 = vsel %vm891, %v1083, 0.0
          %v1136 = vadd.f32 %v1134, %v1135
          %v1137 = vsel %vm891, %v1084, 0.0
          %v1138 = vadd.f32 %v1136, %v1137
          %v1139 = vsel %vm891, %v1085, 0.0
          %v1140 = vadd.f32 %v1138, %v1139
          %v1141 = vsel %vm891, %v1086, 0.0
          %v1142 = vadd.f32 %v1140, %v1141
          %v1143 = vsel %vm891, %v1087, 0.0
          %v1144 = vadd.f32 %v1142, %v1143
          %v1145 = vsel %vm891, %v1088, 0.0
          %v1146 = vadd.f32 %v1144, %v1145
          %v1147 = vsel %vm891, %v1089, 0.0
          %v1148 = vadd.f32 %v1146, %v1147
          %v1149 = vsel %vm891, %v1090, 0.0
          %v1150 = vadd.f32 %v1148, %v1149
          %v1151 = vsel %vm891, %v1091, 0.0
          %v1152 = vadd.f32 %v1150, %v1151
          %v1153 = vsel %vm891, %v1092, 0.0
          %v1154 = vadd.f32 %v1152, %v1153
          %v1155 = vsel %vm891, %v1093, 0.0
          %v1156 = vadd.f32 %v1154, %v1155
          %v1157 = vrot.slane %v1156, 4
          %v1158 = vadd.f32 %v1156, %v1157
          %v1159 = vrot.slane %v1158, 2
          %v1160 = vadd.f32 %v1158, %v1159
          %v1161 = vrot.slane %v1160, 1
          %v1162 = vadd.f32 %v1160, %v1161
          %1163 = vst.msk [vmem:[%s272] sm:$0x1] %vm1060, %v1162
        $region36: #{tpu_custom_call.1} parent=27 // pred_fallthru
          _
        %s1164 = smul.u32 32, %s27
        %p1165 = scmp.lt.s32.totalorder %s1164, 255
        %s1166 = scalar_select %p1165, %s1164, 255
        %p1167 = scmp.lt.s32.totalorder %s28, 0
        %s1168 = scalar_select %p1167, %s28, 0
        %s1169 = sadd.s32 %s1168, %s1166
        %s1170 = smul.addr %s1169, 8
        %s1171 = scalar_lea.vmem %s2, %s1170
        %s1172 = sand.u32 %s135, 1
        %s1173 = scalar_lea.sflag [#allocation4], %s1172
        %s1174 = sand.u32 %s135, 1
        %s1175 = scalar_lea.vmem [#allocation3], %s1174
        %s1176 = sand.u32 %s163, 1
        %s1177 = scalar_lea.sflag [#allocation6], %s1176
        %s1178 = sand.u32 %s163, 1
        %s1179 = scalar_lea.vmem [#allocation5], %s1178
        // Predicated region
        $region37: #{tpu_custom_call.1} parent=27 // pred_check
          %p1180 = pneg %p117
        $region38: #{tpu_custom_call.1} parent=27 // pred_check_branch
          %1182 = sbr.rel (%p1180) target = $region40
        $region39: #{tpu_custom_call.1} parent=27 // pred_region
          %s1183 = smul.u32 32, %s27
        $region40: #{tpu_custom_call.1} parent=27 // pred_fallthru
          _
        // Predicated region
        $region41: #{tpu_custom_call.1} parent=27 // pred_check
          %p1184 = pneg %p145
        $region42: #{tpu_custom_call.1} parent=27 // pred_check_branch
          %1186 = sbr.rel (%p1184) target = $region44
        $region43: #{tpu_custom_call.1} parent=27 // pred_region
          %1188 = vsyncadd %s1173, 0
          %s1189 = sadd.s32 %s28, %s27
          %s1190 = scalar_lea.hbm %s3, %s1189
          %s1192 = sshll.u32 %s1175, 4
          %s1193 = int_to_ptr.vmem [resolvable:$true] %s1192
          %s1194 = sshll.u32 %s1190, 4
          %s1195 = int_to_ptr.hbm [resolvable:$true] %s1194
          %1197 = dma.vmem_to_hbm [thread:$0]  %s1193, 16, %s1195, %s1173
        $region44: #{tpu_custom_call.1} parent=27 // pred_fallthru
          _
        // Predicated region
        $region45: #{tpu_custom_call.1} parent=27 // pred_check
          %p1198 = pneg %p173
        $region46: #{tpu_custom_call.1} parent=27 // pred_check_branch
          %1200 = sbr.rel (%p1198) target = $region48
        $region47: #{tpu_custom_call.1} parent=27 // pred_region
          %1202 = vsyncadd %s1177, 0
          %s1203 = sadd.s32 %s28, %s27
          %s1204 = scalar_lea.hbm %s4, %s1203
          %s1206 = sshll.u32 %s1179, 4
          %s1207 = int_to_ptr.vmem [resolvable:$true] %s1206
          %s1208 = sshll.u32 %s1204, 4
          %s1209 = int_to_ptr.hbm [resolvable:$true] %s1208
          %1211 = dma.vmem_to_hbm [thread:$0]  %s1207, 16, %s1209, %s1177
        $region48: #{tpu_custom_call.1} parent=27 // pred_fallthru
          _
      $region28: #{tpu_custom_call.1} parent=5 // pred_fallthru
        _
      %p1212 = scmp.le.s32.totalorder 2, %s17
      // Predicated region
      $region49: #{tpu_custom_call.1} parent=5 // pred_check
        %p1213 = pneg %p1212
      $region50: #{tpu_custom_call.1} parent=5 // pred_check_branch
        %1215 = sbr.rel (%p1213) target = $region52
      $region51: #{tpu_custom_call.1} parent=5 // pred_region
        %s1216 = ssub.s32 %s17, 2
        // Predicated region
        $region53: #{tpu_custom_call.1} parent=51 // pred_check
          %p1217 = pneg %p123
        $region54: #{tpu_custom_call.1} parent=51 // pred_check_branch
          %1219 = sbr.rel (%p1217) target = $region56
        $region55: #{tpu_custom_call.1} parent=51 // pred_region
          %s1220 = smul.u32 32, %s30
          %p1221 = scmp.lt.s32.totalorder %s1220, 255
          %s1222 = scalar_select %p1221, %s1220, 255
          %p1223 = scmp.lt.s32.totalorder %s31, 0
          %s1224 = scalar_select %p1223, %s31, 0
          %s1225 = sadd.s32 %s1224, %s1222
          %s1226 = smul.addr %s1225, 8
          %s1227 = scalar_lea.vmem %s2, %s1226
        $region56: #{tpu_custom_call.1} parent=51 // pred_fallthru
          _
        // Predicated region
        $region57: #{tpu_custom_call.1} parent=51 // pred_check
          %p1228 = pneg %p151
        $region58: #{tpu_custom_call.1} parent=51 // pred_check_branch
          %1230 = sbr.rel (%p1228) target = $region60
        $region59: #{tpu_custom_call.1} parent=51 // pred_region
          %s1231 = sand.u32 %s136, 1
          %s1232 = scalar_lea.sflag [#allocation4], %s1231
          %s1233 = sand.u32 %s136, 1
          %s1234 = scalar_lea.vmem [#allocation3], %s1233
          %1236 = dma.done %s1232, 16
        $region60: #{tpu_custom_call.1} parent=51 // pred_fallthru
          _
        // Predicated region
        $region61: #{tpu_custom_call.1} parent=51 // pred_check
          %p1237 = pneg %p179
        $region62: #{tpu_custom_call.1} parent=51 // pred_check_branch
          %1239 = sbr.rel (%p1237) target = $region64
        $region63: #{tpu_custom_call.1} parent=51 // pred_region
          %s1240 = sand.u32 %s164, 1
          %s1241 = scalar_lea.sflag [#allocation6], %s1240
          %s1242 = sand.u32 %s164, 1
          %s1243 = scalar_lea.vmem [#allocation5], %s1242
          %1245 = dma.done %s1241, 16
        $region64: #{tpu_custom_call.1} parent=51 // pred_fallthru
          _
      $region52: #{tpu_custom_call.1} parent=5 // pred_fallthru
        _
    $region6: #{tpu_custom_call.1} parent=1 // loop_footer
      %s21 = sadd.s32 1, %s17
    $region7: #{tpu_custom_call.1} parent=1 // loop_footer_branch
      %16 = sbr.rel target = $region3
    $region8: #{tpu_custom_call.1} parent=1 // loop_exit
      _
    %1246 = vsyncpa [#allocation4], 1
    %s1247 = scalar_lea.sflag [#allocation4], 1
    %1248 = vsyncpa %s1247, 1
    %1249 = vsyncpa [#allocation6], 1
    %s1250 = scalar_lea.sflag [#allocation6], 1
    %1251 = vsyncpa %s1250, 1

</llo_original>
